<compile_context>
chip_gen: v7x
topology: tpu7x:2x2x1
jax: 0.10.0
libtpu: 0.0.40
codegen_flags: <defaults>
</compile_context>

<pallas_src>
import functools

import jax
import jax.numpy as jnp
from jax.experimental import pallas as pl
from jax.experimental.pallas import tpu as pltpu


def _write_partials(o_ref, h_sum, w_sum):
    # Fill sublane-row 0 with h_sum and row 1 with w_sum across all 128 lanes
    # (single small store per grid step); the wrapper reads lane 0.
    row = jax.lax.broadcasted_iota(jnp.int32, (1, 2, 128), dimension=1)
    o_ref[...] = jnp.where(row == 0, h_sum, w_sum)


def _tv_kernel_flat(hmask_ref, wmask_ref, x_ref, o_ref, *, hshift, wshift):
    # x_ref: (TB, H*W) lane-dense block.  masks: (1, H*W) f32 {0,1}.
    x = x_ref[...].astype(jnp.float32)
    # Vertical neighbours:   d[i] = x[i] - x[i-W], valid where i >= W  (hmask).
    xh = pltpu.roll(x, shift=hshift, axis=1) if hshift else x
    # Horizontal neighbours: d[i] = x[i] - x[i-1], valid where i % W != 0 (wmask).
    xw = pltpu.roll(x, shift=wshift, axis=1) if wshift else x
    dh = x - xh
    dw = x - xw
    h_sum = jnp.sum(dh * dh * hmask_ref[...])
    w_sum = jnp.sum(dw * dw * wmask_ref[...])
    _write_partials(o_ref, h_sum, w_sum)


def _tv_kernel_3d(x_ref, o_ref):
    # Fallback: x_ref is a (TB, H, W) block; shifted-slice differences.
    x = x_ref[...]
    dh = (x[:, 1:, :] - x[:, :-1, :]).astype(jnp.float32)
    dw = (x[:, :, 1:] - x[:, :, :-1]).astype(jnp.float32)
    _write_partials(o_ref, jnp.sum(dh * dh), jnp.sum(dw * dw))


def tv_loss(x, tv_loss_weight: float = 1.0, *, block_slabs=None, force_3d=False):
    """Pallas TV loss. x: (B, C, H, W) float array. Returns scalar float32."""
    bz, c, h, w = x.shape
    n = bz * c
    hw = h * w
    itemsize = jnp.dtype(x.dtype).itemsize
    use_flat = (not force_3d) and (hw % 128 == 0)

    if block_slabs is None:
        # ~256K input elements per grid step (>=85% of HBM roofline; fits
        # double-buffered input + f32 temporaries in every generation's VMEM).
        budget_elems = 256 * 1024
        block_slabs = max(1, budget_elems // max(hw, 1))
    tb = max(1, min(int(block_slabs), n))
    num_blocks = pl.cdiv(n, tb)
    n_pad = num_blocks * tb

    out_shape = jax.ShapeDtypeStruct((num_blocks, 2, 128), jnp.float32)
    out_spec = pl.BlockSpec((1, 2, 128), lambda i: (i, 0, 0))
    cparams = pltpu.CompilerParams(
        dimension_semantics=("parallel",),
        vmem_limit_bytes=32 * 1024 * 1024,
    )
    cost = pl.CostEstimate(
        flops=8 * n * hw,
        transcendentals=0,
        bytes_accessed=n * hw * itemsize + num_blocks * 2 * 128 * 4,
    )

    if use_flat:
        x2 = x.reshape(n, hw)
        if n_pad != n:
            # Zero-padded slabs contribute exactly 0 to both sums.
            x2 = jnp.pad(x2, ((0, n_pad - n), (0, 0)))
        idx = jnp.arange(hw, dtype=jnp.int32)
        hmask = (idx >= w).astype(jnp.float32).reshape(1, hw)
        wmask = ((idx % w) != 0).astype(jnp.float32).reshape(1, hw)
        kernel = functools.partial(_tv_kernel_flat,
                                   hshift=w % hw, wshift=1 % hw)
        partials = pl.pallas_call(
            kernel,
            out_shape=out_shape,
            grid_spec=pltpu.PrefetchScalarGridSpec(
                num_scalar_prefetch=0,
                grid=(num_blocks,),
                in_specs=[
                    pl.BlockSpec((1, hw), lambda i: (0, 0)),
                    pl.BlockSpec((1, hw), lambda i: (0, 0)),
                    pl.BlockSpec((tb, hw), lambda i: (i, 0)),
                ],
                out_specs=out_spec,
            ),
            compiler_params=cparams,
            cost_estimate=cost,
        )(hmask, wmask, x2)
    else:
        x2 = x.reshape(n, h, w)
        if n_pad != n:
            x2 = jnp.pad(x2, ((0, n_pad - n), (0, 0), (0, 0)))
        partials = pl.pallas_call(
            _tv_kernel_3d,
            out_shape=out_shape,
            grid_spec=pltpu.PrefetchScalarGridSpec(
                num_scalar_prefetch=0,
                grid=(num_blocks,),
                in_specs=[pl.BlockSpec((tb, h, w), lambda i: (i, 0, 0))],
                out_specs=out_spec,
            ),
            compiler_params=cparams,
            cost_estimate=cost,
        )(x2)

    h_tv = jnp.sum(partials[:, 0, 0])
    w_tv = jnp.sum(partials[:, 1, 0])
    # NOTE: h == 1 or w == 1 divides by zero, matching the PyTorch module.
    count_h = c * (h - 1) * w
    count_w = c * h * (w - 1)
    return tv_loss_weight * 2.0 * (h_tv / count_h + w_tv / count_w) / bz


def tv_loss_ref(x, tv_loss_weight: float = 1.0):
    # Pure-JAX reference mirroring the PyTorch module exactly.
    bz, c, h, w = x.shape
    count_h = c * (h - 1) * w
    count_w = c * h * (w - 1)
    h_tv = jnp.sum((x[:, :, 1:, :] - x[:, :, : h - 1, :]) ** 2)
    w_tv = jnp.sum((x[:, :, :, 1:] - x[:, :, :, : w - 1]) ** 2)
    return tv_loss_weight * 2.0 * (h_tv / count_h + w_tv / count_w) / bz


if __name__ == "__main__":
    key = jax.random.PRNGKey(0)
    x = jax.random.normal(key, (2, 4, 16, 16), dtype=jnp.float32)

    # 1) Default fast (flattened, lane-dense) path: single grid step.
    out = jax.block_until_ready(tv_loss(x, tv_loss_weight=1.0))
    ref = jax.block_until_ready(tv_loss_ref(x, tv_loss_weight=1.0))
    assert jnp.allclose(out, ref, rtol=1e-5, atol=1e-6), (out, ref)

    # 2) Flat path, multi-block "parallel" grid with zero padding and a
    #    non-power-of-two width (W=40, H*W=640 is a multiple of 128).
    key2 = jax.random.PRNGKey(1)
    x2 = jax.random.normal(key2, (2, 3, 16, 40), dtype=jnp.float32)
    out2 = jax.block_until_ready(tv_loss(x2, tv_loss_weight=0.5, block_slabs=4))
    ref2 = jax.block_until_ready(tv_loss_ref(x2, tv_loss_weight=0.5))
    assert jnp.allclose(out2, ref2, rtol=1e-5, atol=1e-6), (out2, ref2)

    # 3) Fallback 3-D shifted-slice path (forced), multi-block with padding.
    out3 = jax.block_until_ready(
        tv_loss(x, tv_loss_weight=0.5, block_slabs=3, force_3d=True))
    ref3 = jax.block_until_ready(tv_loss_ref(x, tv_loss_weight=0.5))
    assert jnp.allclose(out3, ref3, rtol=1e-5, atol=1e-6), (out3, ref3)

    # 4) bf16 input through the flat path (diffs accumulated in f32 in-kernel).
    xb = x.astype(jnp.bfloat16)
    out4 = jax.block_until_ready(tv_loss(xb, tv_loss_weight=1.0))
    ref4 = jax.block_until_ready(tv_loss_ref(xb.astype(jnp.float32), 1.0))
    assert jnp.allclose(out4, ref4, rtol=1e-3, atol=1e-4), (out4, ref4)

    print("KERNEL_OK")
</pallas_src>

<mosaic_0001>
module attributes {stable_mosaic.version = 11 : i64} {
  func.func @_tv_kernel_flat(%arg0: i32, %arg1: memref<1x256xf32, #tpu.memory_space<vmem>>, %arg2: memref<1x256xf32, #tpu.memory_space<vmem>>, %arg3: memref<8x256xf32, #tpu.memory_space<vmem>>, %arg4: memref<1x2x128xf32, #tpu.memory_space<vmem>>) attributes {dimension_semantics = [#tpu.dimension_semantics<parallel>], iteration_bounds = array<i64: 1>, scalar_prefetch = 0 : i64, scratch_operands = 0 : i64, tpu.core_type = #tpu.core_type<tc>, window_params = [{pipeline_mode = #tpu.pipeline_mode<synchronous>, transform_indices = @transform_0, window_bounds = array<i64: 1, 256>}, {pipeline_mode = #tpu.pipeline_mode<synchronous>, transform_indices = @transform_1, window_bounds = array<i64: 1, 256>}, {transform_indices = @transform_2, window_bounds = array<i64: 8, 256>}, {transform_indices = @transform_3, window_bounds = array<i64: 1, 2, 128>}]} {
    %c0 = arith.constant 0 : index
    %c0_0 = arith.constant 0 : index
    %0 = vector.load %arg3[%c0, %c0_0] : memref<8x256xf32, #tpu.memory_space<vmem>>, vector<8x256xf32>
    %c16_i32 = arith.constant 16 : i32
    %1 = tpu.dynamic_rotate %0 by %c16_i32 dim 1 : vector<8x256xf32>, i32 -> vector<8x256xf32>
    %c1_i32 = arith.constant 1 : i32
    %2 = tpu.dynamic_rotate %0 by %c1_i32 dim 1 : vector<8x256xf32>, i32 -> vector<8x256xf32>
    %3 = arith.subf %0, %1 : vector<8x256xf32>
    %4 = arith.subf %0, %2 : vector<8x256xf32>
    %5 = arith.mulf %3, %3 : vector<8x256xf32>
    %c0_1 = arith.constant 0 : index
    %c0_2 = arith.constant 0 : index
    %6 = vector.load %arg1[%c0_1, %c0_2] : memref<1x256xf32, #tpu.memory_space<vmem>>, vector<1x256xf32>
    %7 = vector.broadcast %6 : vector<1x256xf32> to vector<8x256xf32>
    %8 = arith.mulf %5, %7 : vector<8x256xf32>
    %9 = vector.shape_cast %8 : vector<8x256xf32> to vector<1x8x256xf32>
    %cst = arith.constant dense<0.000000e+00> : vector<1xf32>
    %10 = vector.multi_reduction <add>, %9, %cst [1, 2] : vector<1x8x256xf32> to vector<1xf32>
    %11 = vector.shape_cast %10 : vector<1xf32> to vector<1x1x1xf32>
    %12 = vector.extract %11[0, 0, 0] : f32 from vector<1x1x1xf32>
    %13 = arith.mulf %4, %4 : vector<8x256xf32>
    %c0_3 = arith.constant 0 : index
    %c0_4 = arith.constant 0 : index
    %14 = vector.load %arg2[%c0_3, %c0_4] : memref<1x256xf32, #tpu.memory_space<vmem>>, vector<1x256xf32>
    %15 = vector.broadcast %14 : vector<1x256xf32> to vector<8x256xf32>
    %16 = arith.mulf %13, %15 : vector<8x256xf32>
    %17 = vector.shape_cast %16 : vector<8x256xf32> to vector<1x8x256xf32>
    %cst_5 = arith.constant dense<0.000000e+00> : vector<1xf32>
    %18 = vector.multi_reduction <add>, %17, %cst_5 [1, 2] : vector<1x8x256xf32> to vector<1xf32>
    %19 = vector.shape_cast %18 : vector<1xf32> to vector<1x1x1xf32>
    %20 = vector.extract %19[0, 0, 0] : f32 from vector<1x1x1xf32>
    %21 = tpu.iota {dimensions = array<i32: 1>} : vector<1x2x128xi32>
    %c0_i32 = arith.constant 0 : i32
    %22 = vector.broadcast %c0_i32 : i32 to vector<1x2x128xi32>
    %23 = arith.cmpi eq, %21, %22 : vector<1x2x128xi32>
    %24 = vector.broadcast %12 : f32 to vector<1x2x128xf32>
    %25 = vector.broadcast %20 : f32 to vector<1x2x128xf32>
    %26 = arith.select %23, %24, %25 : vector<1x2x128xi1>, vector<1x2x128xf32>
    %c0_6 = arith.constant 0 : index
    %c0_7 = arith.constant 0 : index
    %c0_8 = arith.constant 0 : index
    %27 = vector.load %arg4[%c0_6, %c0_7, %c0_8] : memref<1x2x128xf32, #tpu.memory_space<vmem>>, vector<1x2x128xf32>
    tpu.vector_store %arg4[%c0_6, %c0_7, %c0_8], %26 {strides = array<i32>} : memref<1x2x128xf32, #tpu.memory_space<vmem>>, vector<1x2x128xf32>,
    return
  }
  func.func @transform_0(%arg0: i32) -> (i32, i32) {
    %c0_i32 = arith.constant 0 : i32
    %c0_i32_0 = arith.constant 0 : i32
    %c0_i32_1 = arith.constant 0 : i32
    return %c0_i32, %c0_i32_0 : i32, i32
  }
  func.func @transform_1(%arg0: i32) -> (i32, i32) {
    %c0_i32 = arith.constant 0 : i32
    %c0_i32_0 = arith.constant 0 : i32
    %c0_i32_1 = arith.constant 0 : i32
    return %c0_i32, %c0_i32_0 : i32, i32
  }
  func.func @transform_2(%arg0: i32) -> (i32, i32) {
    %c0_i32 = arith.constant 0 : i32
    %c0_i32_0 = arith.constant 0 : i32
    return %arg0, %c0_i32 : i32, i32
  }
  func.func @transform_3(%arg0: i32) -> (i32, i32, i32) {
    %c0_i32 = arith.constant 0 : i32
    %c0_i32_0 = arith.constant 0 : i32
    %c0_i32_1 = arith.constant 0 : i32
    return %arg0, %c0_i32, %c0_i32_0 : i32, i32, i32
  }
}

</mosaic_0001>

<llo_original>
// kernel: tpu_custom_call.1
$region0: #{tpu_custom_call.1}
  #allocation0 [shape = 'u32[]', space=smem, size = 0x4, offset = 0x4, fixed_abs, tag = 'smem constant byte address 0x4 - core index']
  #allocation1 [shape = 'u32[144,128]{1,0:T(1,128)}', space=vmem, size = 0x12000, scoped, tag = 'internal scratch']
  %s0 = inlined_call_operand.hbm [shape: f32[1,256], index: 0, kind: input, shape index: {}]
  %s1 = inlined_call_operand.vmem [shape: f32[1,256], index: 1, kind: input, shape index: {}]
  %s2 = inlined_call_operand.hbm [shape: f32[8,256], index: 2, kind: input, shape index: {}]
  %s3 = inlined_call_operand.hbm [shape: f32[1,2,128], index: 3, kind: output, shape index: {}]
  %s4 = sld [smem:[#allocation0]]
  $region30: #{tpu_custom_call.1} parent=0
    _
  %s6 = ssub.s32 1, %s4
  %s7 = scalar_select 0, %s6, %s4
  $region1: #{tpu_custom_call.1} parent=0
    #allocation2 [shape = 'u8[1024]{0}', space=vmem, size = 0x400, scoped, tag = 'input window, operand 0, single buffered']
    #allocation3 [shape = 's32[1]{0}', space=sflag, size = 0x4, scoped, tag = 'scoped memory for tpu_custom_call.1']
    #allocation4 [shape = 's32[1]{0}', space=sflag, size = 0x4, scoped, tag = 'scoped memory for tpu_custom_call.1']
    #allocation5 [shape = 'u8[8192]{0}', space=vmem, size = 0x2000, scoped, tag = 'input window, operand 2, single buffered']
    #allocation6 [shape = 's32[1]{0}', space=sflag, size = 0x4, scoped, tag = 'scoped memory for tpu_custom_call.1']
    #allocation7 [shape = 'u8[1024]{0}', space=vmem, size = 0x400, scoped, tag = 'output window, operand 0, single buffered']
    %8 = vsyncpa [#allocation3], 0
    %9 = vsyncpa [#allocation6], 0
    %10 = vsyncpa [#allocation4], 0
    // Predicated region
    $region2: #{tpu_custom_call.1} parent=1 // pred_check
      _
    $region3: #{tpu_custom_call.1} parent=1 // pred_check_branch
      %12 = sbr.rel (0) target = $region5
    $region4: #{tpu_custom_call.1} parent=1 // pred_region
      %s14 = ssub.s32 32, 32
      %15 = vsyncadd [#allocation3], %s14
      %s17 = sshll.u32 [#allocation2], 4
      %s18 = int_to_ptr.vmem [resolvable:$true] %s17
      %20 = dma.hbm_to_vmem [thread:$0]  %s0, 32, %s18, [#allocation3]
    $region5: #{tpu_custom_call.1} parent=1 // pred_fallthru
      _
    // Predicated region
    $region6: #{tpu_custom_call.1} parent=1 // pred_check
      _
    $region7: #{tpu_custom_call.1} parent=1 // pred_check_branch
      %22 = sbr.rel (0) target = $region9
    $region8: #{tpu_custom_call.1} parent=1 // pred_region
      _
    $region9: #{tpu_custom_call.1} parent=1 // pred_fallthru
      _
    // Predicated region
    $region10: #{tpu_custom_call.1} parent=1 // pred_check
      _
    $region11: #{tpu_custom_call.1} parent=1 // pred_check_branch
      %24 = sbr.rel (0) target = $region13
    $region12: #{tpu_custom_call.1} parent=1 // pred_region
      %s26 = ssub.s32 256, 256
      %27 = vsyncadd [#allocation6], %s26
      %s29 = sshll.u32 [#allocation5], 4
      %s30 = int_to_ptr.vmem [resolvable:$true] %s29
      %32 = dma.hbm_to_vmem [thread:$0]  %s2, 256, %s30, [#allocation6]
    $region13: #{tpu_custom_call.1} parent=1 // pred_fallthru
      _
    // Predicated region
    $region14: #{tpu_custom_call.1} parent=1 // pred_check
      _
    $region15: #{tpu_custom_call.1} parent=1 // pred_check_branch
      %34 = sbr.rel (0) target = $region17
    $region16: #{tpu_custom_call.1} parent=1 // pred_region
      %35 = dma.done [#allocation3], 32
    $region17: #{tpu_custom_call.1} parent=1 // pred_fallthru
      _
    // Predicated region
    $region18: #{tpu_custom_call.1} parent=1 // pred_check
      _
    $region19: #{tpu_custom_call.1} parent=1 // pred_check_branch
      %37 = sbr.rel (0) target = $region21
    $region20: #{tpu_custom_call.1} parent=1 // pred_region
      %38 = dma.done [#allocation6], 256
    $region21: #{tpu_custom_call.1} parent=1 // pred_fallthru
      _
    %v39 = vld [vmem:[#allocation5] sm:$0xff]
    %v40 = vld [vmem:[#allocation5 + $0x8] sm:$0xff]
    %41 = vrot.lane.b32.xlu0 %v39, 16
    %v42 = vpop.permute.xlu0 %41
    %43 = vrot.lane.b32.xlu0 %v40, 16
    %v44 = vpop.permute.xlu0 %43
    %v45 = vlaneseq
    %v46 = vand.u32 %v45, 127
    %vm47 = vcmp.lt.s32.totalorder %v46, 16
    %v48 = vsel %vm47, %v42, %v44
    %v49 = vsel %vm47, %v44, %v42
    %50 = vrot.lane.b32.xlu0 %v39, 1
    %v51 = vpop.permute.xlu0 %50
    %52 = vrot.lane.b32.xlu0 %v40, 1
    %v53 = vpop.permute.xlu0 %52
    %vm54 = vcmp.lt.s32.totalorder %v46, 1
    %v55 = vsel %vm54, %v51, %v53
    %v56 = vsel %vm54, %v53, %v51
    %v57 = vsub.f32 %v39, %v49
    %v58 = vsub.f32 %v40, %v48
    %v59 = vsub.f32 %v39, %v56
    %v60 = vsub.f32 %v40, %v55
    %v61 = vmul.f32 %v57, %v57
    %v62 = vmul.f32 %v58, %v58
    %v63 = vld [vmem:[#allocation2] sm:$0x3]
    %v65 = vlaneseq
    %v66 = vshrl.u32 %v65, 7
    %v67 = vsub.s32 0, %v66
    %v68 = vrot.slane %v63, %v67
    %v69 = vlaneseq
    %v70 = vshrl.u32 %v69, 7
    %v71 = vsub.s32 1, %v70
    %v72 = vrot.slane %v63, %v71
    %v75 = vmul.f32 %v61, %v68
    %v76 = vmul.f32 %v62, %v72
    %v77 = vadd.f32 %v75, %v76
    %78 = vadd.xlane.f32.xlu0 %v77
    %v79 = vpop.xlane.xlu0 %78
    %v80 = vrot.slane %v79, 4
    %v81 = vadd.f32 %v79, %v80
    %v82 = vrot.slane %v81, 2
    %v83 = vadd.f32 %v81, %v82
    %v84 = vrot.slane %v83, 1
    %v85 = vadd.f32 %v83, %v84
    %s86 = vtos %v85
    %v87 = vmul.f32 %v59, %v59
    %v88 = vmul.f32 %v60, %v60
    %v89 = vld [vmem:[%s1] sm:$0x3]
    %v91 = vlaneseq
    %v92 = vshrl.u32 %v91, 7
    %v93 = vsub.s32 0, %v92
    %v94 = vrot.slane %v89, %v93
    %v95 = vlaneseq
    %v96 = vshrl.u32 %v95, 7
    %v97 = vsub.s32 1, %v96
    %v98 = vrot.slane %v89, %v97
    %v101 = vmul.f32 %v87, %v94
    %v102 = vmul.f32 %v88, %v98
    %v103 = vadd.f32 %v101, %v102
    %104 = vadd.xlane.f32.xlu0 %v103
    %v105 = vpop.xlane.xlu0 %104
    %v106 = vrot.slane %v105, 4
    %v107 = vadd.f32 %v105, %v106
    %v108 = vrot.slane %v107, 2
    %v109 = vadd.f32 %v107, %v108
    %v110 = vrot.slane %v109, 1
    %v111 = vadd.f32 %v109, %v110
    %s112 = vtos %v111
    %v113 = vlaneseq
    %v114 = vshrl.u32 %v113, 7
    %vm115 = vcmp.eq.s32.totalorder %v114, 0
    %v116 = vstv %s86
    %v117 = vstv %s112
    %v118 = vsel %vm115, %v116, %v117
    %119 = vst [vmem:[#allocation7] sm:$0x3] %v118
    // Predicated region
    $region22: #{tpu_custom_call.1} parent=1 // pred_check
      _
    $region23: #{tpu_custom_call.1} parent=1 // pred_check_branch
      %121 = sbr.rel (0) target = $region25
    $region24: #{tpu_custom_call.1} parent=1 // pred_region
      %s123 = ssub.s32 32, 32
      %124 = vsyncadd [#allocation4], %s123
      %s126 = sshll.u32 [#allocation7], 4
      %s127 = int_to_ptr.vmem [resolvable:$true] %s126
      %129 = dma.vmem_to_hbm [thread:$0]  %s127, 32, %s3, [#allocation4]
    $region25: #{tpu_custom_call.1} parent=1 // pred_fallthru
      _
    // Predicated region
    $region26: #{tpu_custom_call.1} parent=1 // pred_check
      _
    $region27: #{tpu_custom_call.1} parent=1 // pred_check_branch
      %131 = sbr.rel (0) target = $region29
    $region28: #{tpu_custom_call.1} parent=1 // pred_region
      %132 = dma.done [#allocation4], 32
    $region29: #{tpu_custom_call.1} parent=1 // pred_fallthru
      _
    %133 = vsyncpa [#allocation3], 1
    %134 = vsyncpa [#allocation6], 1
    %135 = vsyncpa [#allocation4], 1

</llo_original>
